<compile_context>
chip_gen: v7x
topology: tpu7x:2x2x1
jax: 0.10.0
libtpu: 0.0.40
codegen_flags: <defaults>
</compile_context>

<pallas_src>
import jax
import jax.numpy as jnp
from jax.experimental import pallas as pl
from jax.experimental.pallas import tpu as pltpu

HALF_LOG_2PI = 0.9189385332046727  # 0.5 * log(2*pi)


def _softplus(x):
    # Numerically stable softplus, written identically in kernel and reference.
    return jnp.maximum(x, 0.0) + jnp.log(1.0 + jnp.exp(-jnp.abs(x)))


def actor_kernel(xT_ref, epsT_ref,
                 w1_ref, b1_ref, w2_ref, b2_ref, wh_ref, bh_ref,
                 out_ref):
    # All tensors are transposed: batch on the lane (last) axis.
    A = epsT_ref.shape[0]

    x = xT_ref[...]                                                       # [S,  TB]
    h = jnp.dot(w1_ref[...], x, preferred_element_type=jnp.float32) + b1_ref[...]
    h = jnp.maximum(h, 0.0)                                               # [H1, TB]
    h = jnp.dot(w2_ref[...], h, preferred_element_type=jnp.float32) + b2_ref[...]
    h = jnp.maximum(h, 0.0)                                               # [H2, TB]

    # Fused mu|sigma head: one matmul, split rows afterwards.
    head = jnp.dot(wh_ref[...], h, preferred_element_type=jnp.float32) + bh_ref[...]  # [2A, TB]
    mu = head[:A, :]
    sigma = _softplus(head[A:, :])                                        # [A, TB]
    log_sigma = jnp.log(sigma)

    eps = epsT_ref[...]                                                   # [A, TB]
    act_raw = mu + sigma * eps                                            # rsample()

    # Normal entropy / log_prob.  z = (act_raw - mu) / sigma == eps exactly.
    ent = 0.5 + HALF_LOG_2PI + log_sigma
    logp = -0.5 * eps * eps - log_sigma - HALF_LOG_2PI                    # [A, TB]

    # tanh squash + action scaling (action_range = 2) and log-det correction.
    t = jnp.tanh(act_raw)
    logp = logp - jnp.log(2.0 * (1.0 - t * t) + 1e-6)
    logp_sum = jnp.sum(logp, axis=0, keepdims=True)                       # [1, TB]

    # Single packed output slab: rows [0:A)=act, [A:2A)=entropy, [2A]=log_prob.
    out_ref[0:A, :] = (t * 2.0).astype(out_ref.dtype)
    out_ref[A:2 * A, :] = ent.astype(out_ref.dtype)
    out_ref[2 * A:2 * A + 1, :] = logp_sum.astype(out_ref.dtype)


def actor_forward(state, eps, params, *, block_b=4096):
    """state: [B, state_dim] f32, eps: [B, action_num] N(0,1) noise.
    Returns (act [B,A], log_prob [B,1], entropy [B,A])."""
    w1, b1, w2, b2, wmu, bmu, wsg, bsg = params   # PyTorch layout: W [out,in], b [out]
    B, S = state.shape
    H1 = w1.shape[0]
    H2 = w2.shape[0]
    A = wmu.shape[0]
    OUT_ROWS = 2 * A + 1

    # Fused mu|sigma head; biases as columns so they broadcast along the lane axis.
    wh = jnp.concatenate([wmu, wsg], axis=0)          # [2A, H2]
    bh = jnp.concatenate([bmu, bsg], axis=0)[:, None]  # [2A, 1]
    b1c = b1[:, None]                                  # [H1, 1]
    b2c = b2[:, None]                                  # [H2, 1]

    # Lane-dense batch tile: multiple of 128 lanes.
    tb = max(128, min((block_b // 128) * 128, ((B + 127) // 128) * 128))
    n_tiles = -(-B // tb)
    if n_tiles == 1 and B > 128:
        # Keep >=2 grid steps so both v7x TensorCores get work and the pipeline overlaps.
        tb = max(128, (((B + 1) // 2 + 127) // 128) * 128)
        n_tiles = -(-B // tb)
    b_pad = n_tiles * tb

    # Transpose to batch-on-lanes and zero-pad the batch tail (zeros stay finite through
    # the whole kernel; padded columns are sliced away below).
    xT = jnp.pad(state.T, ((0, 0), (0, b_pad - B)))    # [S, b_pad]
    eT = jnp.pad(eps.T, ((0, 0), (0, b_pad - B)))      # [A, b_pad]

    stream = lambda rows: pl.BlockSpec((rows, tb), lambda i: (0, i))       # batch-tiled
    const = lambda shape: pl.BlockSpec(shape, lambda i: (0, 0))            # VMEM-resident

    flops = 2 * b_pad * (S * H1 + H1 * H2 + H2 * 2 * A)
    transcendentals = 5 * b_pad * A  # exp+log (softplus), log(sigma), tanh, log(jac)
    bytes_accessed = 4 * (
        b_pad * (S + A + OUT_ROWS)                                   # streamed in/out
        + H1 * S + H1 + H2 * H1 + H2 + 2 * A * H2 + 2 * A            # resident params
    )

    # Scoped-VMEM default is 32 MiB; only raise it if the double-buffered streams need it.
    vmem_need = 4 * (2 * tb * (S + A + OUT_ROWS)
                     + H1 * S + H1 + H2 * H1 + H2 + 2 * A * (H2 + 1)) + (2 << 20)
    vmem_limit = int(min(vmem_need, 60 * 1024 * 1024)) if vmem_need > (30 << 20) else None

    out = pl.pallas_call(
        actor_kernel,
        out_shape=jax.ShapeDtypeStruct((OUT_ROWS, b_pad), jnp.float32),
        grid=(n_tiles,),
        in_specs=[
            stream(S),                 # state^T
            stream(A),                 # eps^T
            const((H1, S)),            # w1
            const((H1, 1)),            # b1
            const((H2, H1)),           # w2
            const((H2, 1)),            # b2
            const((2 * A, H2)),        # fused mu|sigma weights
            const((2 * A, 1)),         # fused mu|sigma bias
        ],
        out_specs=stream(OUT_ROWS),
        compiler_params=pltpu.CompilerParams(
            dimension_semantics=("parallel",),       # shard batch tiles over v7x's 2 TCs
            vmem_limit_bytes=vmem_limit),
        cost_estimate=pl.CostEstimate(
            flops=flops,
            transcendentals=transcendentals,
            bytes_accessed=bytes_accessed),
    )(xT, eT, w1, b1c, w2, b2c, wh, bh)

    act = out[:A, :B].T                 # [B, A]
    ent = out[A:2 * A, :B].T            # [B, A]
    logp = out[2 * A:2 * A + 1, :B].T   # [B, 1]
    return act, logp, ent


def init_params(key, state_dim, action_num):
    """PyTorch-Linear-like init; weights stored [out, in], biases [out]."""
    def linear(k, fan_in, fan_out):
        kw, kb = jax.random.split(k)
        bound = 1.0 / float(fan_in) ** 0.5
        w = jax.random.uniform(kw, (fan_out, fan_in), jnp.float32, -bound, bound)
        b = jax.random.uniform(kb, (fan_out,), jnp.float32, -bound, bound)
        return w, b

    k1, k2, k3, k4 = jax.random.split(key, 4)
    w1, b1 = linear(k1, state_dim, 32)
    w2, b2 = linear(k2, 32, 16)
    wmu, bmu = linear(k3, 16, action_num)
    wsg, bsg = linear(k4, 16, action_num)
    return (w1, b1, w2, b2, wmu, bmu, wsg, bsg)


def actor_reference(state, eps, params):
    w1, b1, w2, b2, wmu, bmu, wsg, bsg = params
    h = jnp.maximum(state @ w1.T + b1, 0.0)
    h = jnp.maximum(h @ w2.T + b2, 0.0)
    mu = h @ wmu.T + bmu
    sigma = _softplus(h @ wsg.T + bsg)
    act_raw = mu + sigma * eps
    entropy = 0.5 + HALF_LOG_2PI + jnp.log(sigma)
    logp = -0.5 * eps * eps - jnp.log(sigma) - HALF_LOG_2PI
    t = jnp.tanh(act_raw)
    act = t * 2.0
    logp = logp - jnp.log(2.0 * (1.0 - t * t) + 1e-6)
    logp = jnp.sum(logp, axis=1, keepdims=True)
    return act, logp, entropy


def _check(B, state_dim, action_num, key, **kw):
    k_params, k_state, k_eps = jax.random.split(key, 3)
    params = init_params(k_params, state_dim, action_num)
    state = jax.random.normal(k_state, (B, state_dim), jnp.float32)
    eps = jax.random.normal(k_eps, (B, action_num), jnp.float32)

    act, logp, ent = actor_forward(state, eps, params, **kw)
    act, logp, ent = jax.block_until_ready((act, logp, ent))

    ref_act, ref_logp, ref_ent = actor_reference(state, eps, params)
    assert act.shape == (B, action_num), act.shape
    assert logp.shape == (B, 1), logp.shape
    assert ent.shape == (B, action_num), ent.shape
    assert jnp.allclose(act, ref_act, atol=1e-4, rtol=1e-4), "act mismatch"
    assert jnp.allclose(logp, ref_logp, atol=1e-4, rtol=1e-4), "log_prob mismatch"
    assert jnp.allclose(ent, ref_ent, atol=1e-4, rtol=1e-4), "entropy mismatch"


if __name__ == "__main__":
    key = jax.random.PRNGKey(0)
    k_small, k_multi = jax.random.split(key)

    STATE_DIM = 16
    ACTION_NUM = 4

    # Small batch (B not a multiple of 128) -> exercises the padded single-tile path.
    _check(20, STATE_DIM, ACTION_NUM, k_small)

    # Slightly larger batch -> exercises the >=2-grid-step (two-TC) path and padding tail.
    _check(300, STATE_DIM, ACTION_NUM, k_multi)

    print("KERNEL_OK")
</pallas_src>

<mosaic_0001>
module attributes {stable_mosaic.version = 11 : i64} {
  func.func @actor_kernel(%arg0: i32, %arg1: memref<16x128xf32, #tpu.memory_space<vmem>>, %arg2: memref<4x128xf32, #tpu.memory_space<vmem>>, %arg3: memref<32x16xf32, #tpu.memory_space<vmem>>, %arg4: memref<32x1xf32, #tpu.memory_space<vmem>>, %arg5: memref<16x32xf32, #tpu.memory_space<vmem>>, %arg6: memref<16x1xf32, #tpu.memory_space<vmem>>, %arg7: memref<8x16xf32, #tpu.memory_space<vmem>>, %arg8: memref<8x1xf32, #tpu.memory_space<vmem>>, %arg9: memref<9x128xf32, #tpu.memory_space<vmem>>) attributes {dimension_semantics = [#tpu.dimension_semantics<parallel>], iteration_bounds = array<i64: 1>, scalar_prefetch = 0 : i64, scratch_operands = 0 : i64, tpu.core_type = #tpu.core_type<tc>, window_params = [{transform_indices = @transform_0, window_bounds = array<i64: 16, 128>}, {transform_indices = @transform_1, window_bounds = array<i64: 4, 128>}, {pipeline_mode = #tpu.pipeline_mode<synchronous>, transform_indices = @transform_2, window_bounds = array<i64: 32, 16>}, {pipeline_mode = #tpu.pipeline_mode<synchronous>, transform_indices = @transform_3, window_bounds = array<i64: 32, 1>}, {pipeline_mode = #tpu.pipeline_mode<synchronous>, transform_indices = @transform_4, window_bounds = array<i64: 16, 32>}, {pipeline_mode = #tpu.pipeline_mode<synchronous>, transform_indices = @transform_5, window_bounds = array<i64: 16, 1>}, {pipeline_mode = #tpu.pipeline_mode<synchronous>, transform_indices = @transform_6, window_bounds = array<i64: 8, 16>}, {pipeline_mode = #tpu.pipeline_mode<synchronous>, transform_indices = @transform_7, window_bounds = array<i64: 8, 1>}, {transform_indices = @transform_8, window_bounds = array<i64: 9, 128>}]} {
    %c0 = arith.constant 0 : index
    %c0_0 = arith.constant 0 : index
    %0 = vector.load %arg1[%c0, %c0_0] : memref<16x128xf32, #tpu.memory_space<vmem>>, vector<16x128xf32>
    %c0_1 = arith.constant 0 : index
    %c0_2 = arith.constant 0 : index
    %1 = vector.load %arg3[%c0_1, %c0_2] : memref<32x16xf32, #tpu.memory_space<vmem>>, vector<32x16xf32>
    %cst = arith.constant dense<0.000000e+00> : vector<32x128xf32>
    %2 = tpu.matmul %1, %0, %cst {dimension_numbers = #tpu.dot_dimension_numbers<[1], [0], [0], [1], [0, 0, 1, 1], [], []>} : vector<32x16xf32>, vector<16x128xf32>, vector<32x128xf32> -> vector<32x128xf32>
    %c0_3 = arith.constant 0 : index
    %c0_4 = arith.constant 0 : index
    %3 = vector.load %arg4[%c0_3, %c0_4] : memref<32x1xf32, #tpu.memory_space<vmem>>, vector<32x1xf32>
    %4 = vector.broadcast %3 : vector<32x1xf32> to vector<32x128xf32>
    %5 = arith.addf %2, %4 : vector<32x128xf32>
    %cst_5 = arith.constant 0.000000e+00 : f32
    %6 = vector.broadcast %cst_5 : f32 to vector<32x128xf32>
    %7 = arith.maximumf %5, %6 : vector<32x128xf32>
    %c0_6 = arith.constant 0 : index
    %c0_7 = arith.constant 0 : index
    %8 = vector.load %arg5[%c0_6, %c0_7] : memref<16x32xf32, #tpu.memory_space<vmem>>, vector<16x32xf32>
    %cst_8 = arith.constant dense<0.000000e+00> : vector<16x128xf32>
    %9 = tpu.matmul %8, %7, %cst_8 {dimension_numbers = #tpu.dot_dimension_numbers<[1], [0], [0], [1], [0, 0, 1, 1], [], []>} : vector<16x32xf32>, vector<32x128xf32>, vector<16x128xf32> -> vector<16x128xf32>
    %c0_9 = arith.constant 0 : index
    %c0_10 = arith.constant 0 : index
    %10 = vector.load %arg6[%c0_9, %c0_10] : memref<16x1xf32, #tpu.memory_space<vmem>>, vector<16x1xf32>
    %11 = vector.broadcast %10 : vector<16x1xf32> to vector<16x128xf32>
    %12 = arith.addf %9, %11 : vector<16x128xf32>
    %cst_11 = arith.constant 0.000000e+00 : f32
    %13 = vector.broadcast %cst_11 : f32 to vector<16x128xf32>
    %14 = arith.maximumf %12, %13 : vector<16x128xf32>
    %c0_12 = arith.constant 0 : index
    %c0_13 = arith.constant 0 : index
    %15 = vector.load %arg7[%c0_12, %c0_13] : memref<8x16xf32, #tpu.memory_space<vmem>>, vector<8x16xf32>
    %cst_14 = arith.constant dense<0.000000e+00> : vector<8x128xf32>
    %16 = tpu.matmul %15, %14, %cst_14 {dimension_numbers = #tpu.dot_dimension_numbers<[1], [0], [0], [1], [0, 0, 1, 1], [], []>} : vector<8x16xf32>, vector<16x128xf32>, vector<8x128xf32> -> vector<8x128xf32>
    %c0_15 = arith.constant 0 : index
    %c0_16 = arith.constant 0 : index
    %17 = vector.load %arg8[%c0_15, %c0_16] : memref<8x1xf32, #tpu.memory_space<vmem>>, vector<8x1xf32>
    %18 = vector.broadcast %17 : vector<8x1xf32> to vector<8x128xf32>
    %19 = arith.addf %16, %18 : vector<8x128xf32>
    %20 = vector.extract_strided_slice %19 {offsets = [0, 0], sizes = [4, 128], strides = [1, 1]} : vector<8x128xf32> to vector<4x128xf32>
    %21 = vector.extract_strided_slice %19 {offsets = [4, 0], sizes = [4, 128], strides = [1, 1]} : vector<8x128xf32> to vector<4x128xf32>
    %cst_17 = arith.constant 0.000000e+00 : f32
    %22 = vector.broadcast %cst_17 : f32 to vector<4x128xf32>
    %23 = arith.maximumf %21, %22 : vector<4x128xf32>
    %24 = math.absf %21 : vector<4x128xf32>
    %cst_18 = arith.constant 0.000000e+00 : f32
    %25 = vector.broadcast %cst_18 : f32 to vector<4x128xf32>
    %26 = arith.subf %25, %24 : vector<4x128xf32>
    %27 = math.exp %26 : vector<4x128xf32>
    %cst_19 = arith.constant 1.000000e+00 : f32
    %28 = vector.broadcast %cst_19 : f32 to vector<4x128xf32>
    %29 = arith.addf %28, %27 : vector<4x128xf32>
    %30 = math.log %29 : vector<4x128xf32>
    %31 = arith.addf %23, %30 : vector<4x128xf32>
    %32 = math.log %31 : vector<4x128xf32>
    %c0_20 = arith.constant 0 : index
    %c0_21 = arith.constant 0 : index
    %33 = vector.load %arg2[%c0_20, %c0_21] : memref<4x128xf32, #tpu.memory_space<vmem>>, vector<4x128xf32>
    %34 = arith.mulf %31, %33 : vector<4x128xf32>
    %35 = arith.addf %20, %34 : vector<4x128xf32>
    %cst_22 = arith.constant 1.41893852 : f32
    %36 = vector.broadcast %cst_22 : f32 to vector<4x128xf32>
    %37 = arith.addf %36, %32 : vector<4x128xf32>
    %cst_23 = arith.constant -5.000000e-01 : f32
    %38 = vector.broadcast %cst_23 : f32 to vector<4x128xf32>
    %39 = arith.mulf %38, %33 : vector<4x128xf32>
    %40 = arith.mulf %39, %33 : vector<4x128xf32>
    %41 = arith.subf %40, %32 : vector<4x128xf32>
    %cst_24 = arith.constant 0.918938517 : f32
    %42 = vector.broadcast %cst_24 : f32 to vector<4x128xf32>
    %43 = arith.subf %41, %42 : vector<4x128xf32>
    %44 = math.tanh %35 : vector<4x128xf32>
    %45 = arith.mulf %44, %44 : vector<4x128xf32>
    %cst_25 = arith.constant 1.000000e+00 : f32
    %46 = vector.broadcast %cst_25 : f32 to vector<4x128xf32>
    %47 = arith.subf %46, %45 : vector<4x128xf32>
    %cst_26 = arith.constant 2.000000e+00 : f32
    %48 = vector.broadcast %cst_26 : f32 to vector<4x128xf32>
    %49 = arith.mulf %48, %47 : vector<4x128xf32>
    %cst_27 = arith.constant 9.99999997E-7 : f32
    %50 = vector.broadcast %cst_27 : f32 to vector<4x128xf32>
    %51 = arith.addf %49, %50 : vector<4x128xf32>
    %52 = math.log %51 : vector<4x128xf32>
    %53 = arith.subf %43, %52 : vector<4x128xf32>
    %cst_28 = arith.constant dense<0.000000e+00> : vector<128xf32>
    %54 = vector.multi_reduction <add>, %53, %cst_28 [0] : vector<4x128xf32> to vector<128xf32>
    %55 = vector.shape_cast %54 : vector<128xf32> to vector<1x128xf32>
    %cst_29 = arith.constant 2.000000e+00 : f32
    %56 = vector.broadcast %cst_29 : f32 to vector<4x128xf32>
    %57 = arith.mulf %44, %56 : vector<4x128xf32>
    %c0_30 = arith.constant 0 : index
    %c0_31 = arith.constant 0 : index
    %58 = vector.load %arg9[%c0_30, %c0_31] : memref<9x128xf32, #tpu.memory_space<vmem>>, vector<4x128xf32>
    tpu.vector_store %arg9[%c0_30, %c0_31], %57 {strides = array<i32>} : memref<9x128xf32, #tpu.memory_space<vmem>>, vector<4x128xf32>,
    %c4 = arith.constant 4 : index
    %c0_32 = arith.constant 0 : index
    %59 = vector.load %arg9[%c4, %c0_32] : memref<9x128xf32, #tpu.memory_space<vmem>>, vector<4x128xf32>
    tpu.vector_store %arg9[%c4, %c0_32], %37 {strides = array<i32>} : memref<9x128xf32, #tpu.memory_space<vmem>>, vector<4x128xf32>,
    %c8 = arith.constant 8 : index
    %c0_33 = arith.constant 0 : index
    %60 = vector.load %arg9[%c8, %c0_33] : memref<9x128xf32, #tpu.memory_space<vmem>>, vector<1x128xf32>
    tpu.vector_store %arg9[%c8, %c0_33], %55 {strides = array<i32>} : memref<9x128xf32, #tpu.memory_space<vmem>>, vector<1x128xf32>,
    return
  }
  func.func @transform_0(%arg0: i32) -> (i32, i32) {
    %c0_i32 = arith.constant 0 : i32
    %c0_i32_0 = arith.constant 0 : i32
    return %c0_i32, %arg0 : i32, i32
  }
  func.func @transform_1(%arg0: i32) -> (i32, i32) {
    %c0_i32 = arith.constant 0 : i32
    %c0_i32_0 = arith.constant 0 : i32
    return %c0_i32, %arg0 : i32, i32
  }
  func.func @transform_2(%arg0: i32) -> (i32, i32) {
    %c0_i32 = arith.constant 0 : i32
    %c0_i32_0 = arith.constant 0 : i32
    %c0_i32_1 = arith.constant 0 : i32
    return %c0_i32, %c0_i32_0 : i32, i32
  }
  func.func @transform_3(%arg0: i32) -> (i32, i32) {
    %c0_i32 = arith.constant 0 : i32
    %c0_i32_0 = arith.constant 0 : i32
    %c0_i32_1 = arith.constant 0 : i32
    return %c0_i32, %c0_i32_0 : i32, i32
  }
  func.func @transform_4(%arg0: i32) -> (i32, i32) {
    %c0_i32 = arith.constant 0 : i32
    %c0_i32_0 = arith.constant 0 : i32
    %c0_i32_1 = arith.constant 0 : i32
    return %c0_i32, %c0_i32_0 : i32, i32
  }
  func.func @transform_5(%arg0: i32) -> (i32, i32) {
    %c0_i32 = arith.constant 0 : i32
    %c0_i32_0 = arith.constant 0 : i32
    %c0_i32_1 = arith.constant 0 : i32
    return %c0_i32, %c0_i32_0 : i32, i32
  }
  func.func @transform_6(%arg0: i32) -> (i32, i32) {
    %c0_i32 = arith.constant 0 : i32
    %c0_i32_0 = arith.constant 0 : i32
    %c0_i32_1 = arith.constant 0 : i32
    return %c0_i32, %c0_i32_0 : i32, i32
  }
  func.func @transform_7(%arg0: i32) -> (i32, i32) {
    %c0_i32 = arith.constant 0 : i32
    %c0_i32_0 = arith.constant 0 : i32
    %c0_i32_1 = arith.constant 0 : i32
    return %c0_i32, %c0_i32_0 : i32, i32
  }
  func.func @transform_8(%arg0: i32) -> (i32, i32) {
    %c0_i32 = arith.constant 0 : i32
    %c0_i32_0 = arith.constant 0 : i32
    return %c0_i32, %arg0 : i32, i32
  }
}

</mosaic_0001>

<llo_original>
// kernel: tpu_custom_call.1
$region0: #{tpu_custom_call.1}
  #allocation0 [shape = 'u32[]', space=smem, size = 0x4, offset = 0x4, fixed_abs, tag = 'smem constant byte address 0x4 - core index']
  #allocation1 [shape = 'u32[144,128]{1,0:T(1,128)}', space=vmem, size = 0x12000, scoped, tag = 'internal scratch']
  %s0 = inlined_call_operand.vmem [shape: f32[16,128], index: 0, kind: input, shape index: {}]
  %s1 = inlined_call_operand.vmem [shape: f32[4,128], index: 1, kind: input, shape index: {}]
  %s2 = inlined_call_operand.vmem [shape: f32[32,16], index: 2, kind: input, shape index: {}]
  %s3 = inlined_call_operand.vmem [shape: f32[32,1], index: 3, kind: input, shape index: {}]
  %s4 = inlined_call_operand.vmem [shape: f32[16,32], index: 4, kind: input, shape index: {}]
  %s5 = inlined_call_operand.vmem [shape: f32[16,1], index: 5, kind: input, shape index: {}]
  %s6 = inlined_call_operand.vmem [shape: f32[8,16], index: 6, kind: input, shape index: {}]
  %s7 = inlined_call_operand.vmem [shape: f32[8,1], index: 7, kind: input, shape index: {}]
  %s8 = inlined_call_operand.hbm [shape: f32[9,128], index: 8, kind: output, shape index: {}]
  %s9 = sld [smem:[#allocation0]]
  $region42: #{tpu_custom_call.1} parent=0
    _
  %s11 = ssub.s32 1, %s9
  %s12 = scalar_select 0, %s11, %s9
  $region1: #{tpu_custom_call.1} parent=0
    #allocation2 [shape = 'u8[8192]{0}', space=vmem, size = 0x2000, scoped, tag = 'output window, operand 0, single buffered']
    #allocation3 [shape = 's32[1]{0}', space=sflag, size = 0x4, scoped, tag = 'scoped memory for tpu_custom_call.1']
    %13 = vsyncpa [#allocation3], 0
    // Predicated region
    $region2: #{tpu_custom_call.1} parent=1 // pred_check
      _
    $region3: #{tpu_custom_call.1} parent=1 // pred_check_branch
      %15 = sbr.rel (0) target = $region5
    $region4: #{tpu_custom_call.1} parent=1 // pred_region
      _
    $region5: #{tpu_custom_call.1} parent=1 // pred_fallthru
      _
    // Predicated region
    $region6: #{tpu_custom_call.1} parent=1 // pred_check
      _
    $region7: #{tpu_custom_call.1} parent=1 // pred_check_branch
      %17 = sbr.rel (0) target = $region9
    $region8: #{tpu_custom_call.1} parent=1 // pred_region
      _
    $region9: #{tpu_custom_call.1} parent=1 // pred_fallthru
      _
    // Predicated region
    $region10: #{tpu_custom_call.1} parent=1 // pred_check
      _
    $region11: #{tpu_custom_call.1} parent=1 // pred_check_branch
      %19 = sbr.rel (0) target = $region13
    $region12: #{tpu_custom_call.1} parent=1 // pred_region
      _
    $region13: #{tpu_custom_call.1} parent=1 // pred_fallthru
      _
    // Predicated region
    $region14: #{tpu_custom_call.1} parent=1 // pred_check
      _
    $region15: #{tpu_custom_call.1} parent=1 // pred_check_branch
      %21 = sbr.rel (0) target = $region17
    $region16: #{tpu_custom_call.1} parent=1 // pred_region
      _
    $region17: #{tpu_custom_call.1} parent=1 // pred_fallthru
      _
    // Predicated region
    $region18: #{tpu_custom_call.1} parent=1 // pred_check
      _
    $region19: #{tpu_custom_call.1} parent=1 // pred_check_branch
      %23 = sbr.rel (0) target = $region21
    $region20: #{tpu_custom_call.1} parent=1 // pred_region
      _
    $region21: #{tpu_custom_call.1} parent=1 // pred_fallthru
      _
    // Predicated region
    $region22: #{tpu_custom_call.1} parent=1 // pred_check
      _
    $region23: #{tpu_custom_call.1} parent=1 // pred_check_branch
      %25 = sbr.rel (0) target = $region25
    $region24: #{tpu_custom_call.1} parent=1 // pred_region
      _
    $region25: #{tpu_custom_call.1} parent=1 // pred_fallthru
      _
    // Predicated region
    $region26: #{tpu_custom_call.1} parent=1 // pred_check
      _
    $region27: #{tpu_custom_call.1} parent=1 // pred_check_branch
      %27 = sbr.rel (0) target = $region29
    $region28: #{tpu_custom_call.1} parent=1 // pred_region
      _
    $region29: #{tpu_custom_call.1} parent=1 // pred_fallthru
      _
    // Predicated region
    $region30: #{tpu_custom_call.1} parent=1 // pred_check
      _
    $region31: #{tpu_custom_call.1} parent=1 // pred_check_branch
      %29 = sbr.rel (0) target = $region33
    $region32: #{tpu_custom_call.1} parent=1 // pred_region
      _
    $region33: #{tpu_custom_call.1} parent=1 // pred_fallthru
      _
    %v30 = vld [vmem:[%s0] sm:$0xff]
    %v31 = vld [vmem:[%s0 + $0x8] sm:$0xff]
    %v32 = vld [vmem:[%s2] sm:$0xff]
    %v33 = vld [vmem:[%s2 + $0x8] sm:$0xff]
    %v34 = vld [vmem:[%s2 + $0x10] sm:$0xff]
    %v35 = vld [vmem:[%s2 + $0x18] sm:$0xff]
    %v36 = vld [vmem:[%s3] sm:$0xff]
    %v37 = vld [vmem:[%s3 + $0x8] sm:$0xff]
    %v38 = vld [vmem:[%s3 + $0x10] sm:$0xff]
    %v39 = vld [vmem:[%s3 + $0x18] sm:$0xff]
    %41 = vset.pattern.permute.xlu0 0
    %42 = vperm.xlu0 %41, %v36
    %v43 = vpop.permute.xlu0 %42
    %46 = vset.pattern.permute.xlu0 0
    %47 = vperm.xlu0 %46, %v37
    %v48 = vpop.permute.xlu0 %47
    %51 = vset.pattern.permute.xlu0 0
    %52 = vperm.xlu0 %51, %v38
    %v53 = vpop.permute.xlu0 %52
    %56 = vset.pattern.permute.xlu0 0
    %57 = vperm.xlu0 %56, %v39
    %v58 = vpop.permute.xlu0 %57
    %vm60 = vcmask 130048
    %v62 = vsel %vm60, %v32, 0
    %v65 = vsel %vm60, %v33, 0
    %v68 = vsel %vm60, %v34, 0
    %v71 = vsel %vm60, %v35, 0
    %73 = vmatprep.subr.mxu0 0.0
    %74 = vmatpush1.msra.mxu0 %v30
    %75 = vmatprep.subr.mxu0 0.0
    %76 = vmatpush1.msra.mxu0 %v31
    %77 = vmatprep.subr.mxu0 0.0
    %78 = vmatpush1.msra.mxu0 0.0
    %79 = vmatprep.subr.mxu0 0.0
    %80 = vmatpush1.msra.mxu0 0.0
    %81 = vmatprep.subr.mxu0 0.0
    %82 = vmatpush1.msra.mxu0 0.0
    %83 = vmatprep.subr.mxu0 0.0
    %84 = vmatpush1.msra.mxu0 0.0
    %85 = vmatprep.subr.mxu0 0.0
    %86 = vmatpush1.msra.mxu0 0.0
    %87 = vmatprep.subr.mxu0 0.0
    %88 = vmatpush1.msra.mxu0 0.0
    %89 = vmatprep.subr.mxu0 0.0
    %90 = vmatpush1.msra.mxu0 0.0
    %91 = vmatprep.subr.mxu0 0.0
    %92 = vmatpush1.msra.mxu0 0.0
    %93 = vmatprep.subr.mxu0 0.0
    %94 = vmatpush1.msra.mxu0 0.0
    %95 = vmatprep.subr.mxu0 0.0
    %96 = vmatpush1.msra.mxu0 0.0
    %97 = vmatprep.subr.mxu0 0.0
    %98 = vmatpush1.msra.mxu0 0.0
    %99 = vmatprep.subr.mxu0 0.0
    %100 = vmatpush1.msra.mxu0 0.0
    %101 = vmatprep.subr.mxu0 0.0
    %102 = vmatpush1.msra.mxu0 0.0
    %103 = vmatprep.subr.mxu0 0.0
    %104 = vmatpush1.msra.mxu0 0.0
    %105 = vmatprep.subr.mxu0 0.0
    %106 = vmatpush1.msra.mxu0 0.0
    %107 = vmatprep.subr.mxu0 0.0
    %108 = vmatpush1.msra.mxu0 0.0
    %109 = vmatprep.subr.mxu0 0.0
    %110 = vmatpush1.msra.mxu0 0.0
    %111 = vmatprep.subr.mxu0 0.0
    %112 = vmatpush1.msra.mxu0 0.0
    %113 = vmatprep.subr.mxu0 0.0
    %114 = vmatpush1.msra.mxu0 0.0
    %115 = vmatprep.subr.mxu0 0.0
    %116 = vmatpush1.msra.mxu0 0.0
    %117 = vmatprep.subr.mxu0 0.0
    %118 = vmatpush1.msra.mxu0 0.0
    %119 = vmatprep.subr.mxu0 0.0
    %120 = vmatpush1.msra.mxu0 0.0
    %121 = vmatprep.subr.mxu0 0.0
    %122 = vmatpush1.msra.mxu0 0.0
    %123 = vmatprep.subr.mxu0 0.0
    %124 = vmatpush1.msra.mxu0 0.0
    %125 = vmatprep.subr.mxu0 0.0
    %126 = vmatpush1.msra.mxu0 0.0
    %127 = vmatprep.subr.mxu0 0.0
    %128 = vmatpush1.msra.mxu0 0.0
    %129 = vmatprep.subr.mxu0 0.0
    %130 = vmatpush1.msra.mxu0 0.0
    %131 = vmatprep.subr.mxu0 0.0
    %132 = vmatpush1.msra.mxu0 0.0
    %133 = vmatprep.subr.mxu0 0.0
    %134 = vmatpush1.msra.mxu0 0.0
    %135 = vmatprep.subr.mxu0 0.0
    %136 = vmatpush1.msra.mxu0 0.0
    %137 = vmatprep.mubr.f32.mxu0 0.0
    %138 = vmatmul.mubr.f32.gmra.mrb[0].mxu0 %v62
    %v139 = vpop.f32.mrb[0].mxu0
    %v140 = vadd.f32 %v43, %v139
    %v141 = vpop.f32.mrb[0].mxu0
    %142 = vmatprep.mubr.f32.mxu0 0.0
    %143 = vmatmul.mubr.f32.gmra.mrb[0].mxu0 %v65
    %v144 = vpop.f32.mrb[0].mxu0
    %v145 = vadd.f32 %v48, %v144
    %v146 = vpop.f32.mrb[0].mxu0
    %147 = vmatprep.mubr.f32.mxu0 0.0
    %148 = vmatmul.mubr.f32.gmra.mrb[0].mxu0 %v68
    %v149 = vpop.f32.mrb[0].mxu0
    %v150 = vadd.f32 %v53, %v149
    %v151 = vpop.f32.mrb[0].mxu0
    %152 = vmatprep.mubr.f32.mxu0 0.0
    %153 = vmatmul.mubr.f32.gmra.mrb[0].mxu0 %v71
    %v154 = vpop.f32.mrb[0].mxu0
    %v155 = vadd.f32 %v58, %v154
    %v156 = vpop.f32.mrb[0].mxu0
    %157 = vdwg.mxu0
    %v158 = vmax.f32 %v140, 0.0
    %v159 = vmax.f32 %v145, 0.0
    %v160 = vmax.f32 %v150, 0.0
    %v161 = vmax.f32 %v155, 0.0
    %v162 = vld [vmem:[%s4] sm:$0xff]
    %v163 = vld [vmem:[%s4 + $0x8] sm:$0xff]
    %v164 = vld [vmem:[%s5] sm:$0xff]
    %v165 = vld [vmem:[%s5 + $0x8] sm:$0xff]
    %167 = vset.pattern.permute.xlu0 0
    %168 = vperm.xlu0 %167, %v164
    %v169 = vpop.permute.xlu0 %168
    %172 = vset.pattern.permute.xlu0 0
    %173 = vperm.xlu0 %172, %v165
    %v174 = vpop.permute.xlu0 %173
    %vm176 = vcmask 261120
    %v178 = vsel %vm176, %v162, 0
    %v181 = vsel %vm176, %v163, 0
    %183 = vmatprep.subr.mxu0 0.0
    %184 = vmatpush1.msra.mxu0 %v158
    %185 = vmatprep.subr.mxu0 0.0
    %186 = vmatpush1.msra.mxu0 %v159
    %187 = vmatprep.subr.mxu0 0.0
    %188 = vmatpush1.msra.mxu0 %v160
    %189 = vmatprep.subr.mxu0 0.0
    %190 = vmatpush1.msra.mxu0 %v161
    %191 = vmatprep.subr.mxu0 0.0
    %192 = vmatpush1.msra.mxu0 0.0
    %193 = vmatprep.subr.mxu0 0.0
    %194 = vmatpush1.msra.mxu0 0.0
    %195 = vmatprep.subr.mxu0 0.0
    %196 = vmatpush1.msra.mxu0 0.0
    %197 = vmatprep.subr.mxu0 0.0
    %198 = vmatpush1.msra.mxu0 0.0
    %199 = vmatprep.subr.mxu0 0.0
    %200 = vmatpush1.msra.mxu0 0.0
    %201 = vmatprep.subr.mxu0 0.0
    %202 = vmatpush1.msra.mxu0 0.0
    %203 = vmatprep.subr.mxu0 0.0
    %204 = vmatpush1.msra.mxu0 0.0
    %205 = vmatprep.subr.mxu0 0.0
    %206 = vmatpush1.msra.mxu0 0.0
    %207 = vmatprep.subr.mxu0 0.0
    %208 = vmatpush1.msra.mxu0 0.0
    %209 = vmatprep.subr.mxu0 0.0
    %210 = vmatpush1.msra.mxu0 0.0
    %211 = vmatprep.subr.mxu0 0.0
    %212 = vmatpush1.msra.mxu0 0.0
    %213 = vmatprep.subr.mxu0 0.0
    %214 = vmatpush1.msra.mxu0 0.0
    %215 = vmatprep.subr.mxu0 0.0
    %216 = vmatpush1.msra.mxu0 0.0
    %217 = vmatprep.subr.mxu0 0.0
    %218 = vmatpush1.msra.mxu0 0.0
    %219 = vmatprep.subr.mxu0 0.0
    %220 = vmatpush1.msra.mxu0 0.0
    %221 = vmatprep.subr.mxu0 0.0
    %222 = vmatpush1.msra.mxu0 0.0
    %223 = vmatprep.subr.mxu0 0.0
    %224 = vmatpush1.msra.mxu0 0.0
    %225 = vmatprep.subr.mxu0 0.0
    %226 = vmatpush1.msra.mxu0 0.0
    %227 = vmatprep.subr.mxu0 0.0
    %228 = vmatpush1.msra.mxu0 0.0
    %229 = vmatprep.subr.mxu0 0.0
    %230 = vmatpush1.msra.mxu0 0.0
    %231 = vmatprep.subr.mxu0 0.0
    %232 = vmatpush1.msra.mxu0 0.0
    %233 = vmatprep.subr.mxu0 0.0
    %234 = vmatpush1.msra.mxu0 0.0
    %235 = vmatprep.subr.mxu0 0.0
    %236 = vmatpush1.msra.mxu0 0.0
    %237 = vmatprep.subr.mxu0 0.0
    %238 = vmatpush1.msra.mxu0 0.0
    %239 = vmatprep.subr.mxu0 0.0
    %240 = vmatpush1.msra.mxu0 0.0
    %241 = vmatprep.subr.mxu0 0.0
    %242 = vmatpush1.msra.mxu0 0.0
    %243 = vmatprep.subr.mxu0 0.0
    %244 = vmatpush1.msra.mxu0 0.0
    %245 = vmatprep.subr.mxu0 0.0
    %246 = vmatpush1.msra.mxu0 0.0
    %247 = vmatprep.mubr.f32.mxu0 0.0
    %248 = vmatmul.mubr.f32.gmra.mrb[0].mxu0 %v178
    %v249 = vpop.f32.mrb[0].mxu0
    %v250 = vadd.f32 %v169, %v249
    %v251 = vpop.f32.mrb[0].mxu0
    %252 = vmatprep.mubr.f32.mxu0 0.0
    %253 = vmatmul.mubr.f32.gmra.mrb[0].mxu0 %v181
    %v254 = vpop.f32.mrb[0].mxu0
    %v255 = vadd.f32 %v174, %v254
    %v256 = vpop.f32.mrb[0].mxu0
    %257 = vdwg.mxu0
    %v258 = vmax.f32 %v250, 0.0
    %v259 = vmax.f32 %v255, 0.0
    %v260 = vld [vmem:[%s6] sm:$0xff]
    %v261 = vld [vmem:[%s7] sm:$0xff]
    %263 = vset.pattern.permute.xlu0 0
    %264 = vperm.xlu0 %263, %v261
    %v265 = vpop.permute.xlu0 %264
    %v268 = vsel %vm60, %v260, 0
    %270 = vmatprep.subr.mxu0 0.0
    %271 = vmatpush1.msra.mxu0 %v258
    %272 = vmatprep.subr.mxu0 0.0
    %273 = vmatpush1.msra.mxu0 %v259
    %274 = vmatprep.subr.mxu0 0.0
    %275 = vmatpush1.msra.mxu0 0.0
    %276 = vmatprep.subr.mxu0 0.0
    %277 = vmatpush1.msra.mxu0 0.0
    %278 = vmatprep.subr.mxu0 0.0
    %279 = vmatpush1.msra.mxu0 0.0
    %280 = vmatprep.subr.mxu0 0.0
    %281 = vmatpush1.msra.mxu0 0.0
    %282 = vmatprep.subr.mxu0 0.0
    %283 = vmatpush1.msra.mxu0 0.0
    %284 = vmatprep.subr.mxu0 0.0
    %285 = vmatpush1.msra.mxu0 0.0
    %286 = vmatprep.subr.mxu0 0.0
    %287 = vmatpush1.msra.mxu0 0.0
    %288 = vmatprep.subr.mxu0 0.0
    %289 = vmatpush1.msra.mxu0 0.0
    %290 = vmatprep.subr.mxu0 0.0
    %291 = vmatpush1.msra.mxu0 0.0
    %292 = vmatprep.subr.mxu0 0.0
    %293 = vmatpush1.msra.mxu0 0.0
    %294 = vmatprep.subr.mxu0 0.0
    %295 = vmatpush1.msra.mxu0 0.0
    %296 = vmatprep.subr.mxu0 0.0
    %297 = vmatpush1.msra.mxu0 0.0
    %298 = vmatprep.subr.mxu0 0.0
    %299 = vmatpush1.msra.mxu0 0.0
    %300 = vmatprep.subr.mxu0 0.0
    %301 = vmatpush1.msra.mxu0 0.0
    %302 = vmatprep.subr.mxu0 0.0
    %303 = vmatpush1.msra.mxu0 0.0
    %304 = vmatprep.subr.mxu0 0.0
    %305 = vmatpush1.msra.mxu0 0.0
    %306 = vmatprep.subr.mxu0 0.0
    %307 = vmatpush1.msra.mxu0 0.0
    %308 = vmatprep.subr.mxu0 0.0
    %309 = vmatpush1.msra.mxu0 0.0
    %310 = vmatprep.subr.mxu0 0.0
    %311 = vmatpush1.msra.mxu0 0.0
    %312 = vmatprep.subr.mxu0 0.0
    %313 = vmatpush1.msra.mxu0 0.0
    %314 = vmatprep.subr.mxu0 0.0
    %315 = vmatpush1.msra.mxu0 0.0
    %316 = vmatprep.subr.mxu0 0.0
    %317 = vmatpush1.msra.mxu0 0.0
    %318 = vmatprep.subr.mxu0 0.0
    %319 = vmatpush1.msra.mxu0 0.0
    %320 = vmatprep.subr.mxu0 0.0
    %321 = vmatpush1.msra.mxu0 0.0
    %322 = vmatprep.subr.mxu0 0.0
    %323 = vmatpush1.msra.mxu0 0.0
    %324 = vmatprep.subr.mxu0 0.0
    %325 = vmatpush1.msra.mxu0 0.0
    %326 = vmatprep.subr.mxu0 0.0
    %327 = vmatpush1.msra.mxu0 0.0
    %328 = vmatprep.subr.mxu0 0.0
    %329 = vmatpush1.msra.mxu0 0.0
    %330 = vmatprep.subr.mxu0 0.0
    %331 = vmatpush1.msra.mxu0 0.0
    %332 = vmatprep.subr.mxu0 0.0
    %333 = vmatpush1.msra.mxu0 0.0
    %334 = vmatprep.mubr.f32.mxu0 0.0
    %335 = vmatmul.mubr.f32.gmra.mrb[0].mxu0 %v268
    %v336 = vpop.f32.mrb[0].mxu0
    %v337 = vadd.f32 %v265, %v336
    %v338 = vpop.f32.mrb[0].mxu0
    %339 = vdwg.mxu0
    %v340 = vmax.f32 %v337, 0.0
    %v341 = vand.u32 2147483647, %v337
    %v342 = vsub.f32 0.0, %v341
    %v343 = vmul.f32 %v342, 1.442695
    %v344 = vpow.pop %v343
    %v345 = vadd.f32 %v344, 1.0
    %v346 = vlog2.pop %v345
    %v347 = vmul.f32 %v346, 0.6931472
    %v348 = vadd.f32 %v340, %v347
    %v349 = vlog2.pop %v348
    %v350 = vmul.f32 %v349, 0.6931472
    %v351 = vld [vmem:[%s1] sm:$0xf]
    %v353 = vrot.slane %v351, 4
    %v355 = vmul.f32 %v348, %v353
    %v357 = vrot.slane %v355, 4
    %v359 = vadd.f32 %v337, %v357
    %v360 = vadd.f32 %v350, 1.4189385
    %v361 = vmul.f32 %v351, -0.5
    %v362 = vmul.f32 %v361, %v351
    %v364 = vrot.slane %v350, 4
    %v366 = vsub.f32 %v362, %v364
    %v367 = vsub.f32 %v366, 0.9189385
    %v368 = vtanh.pop %v359
    %v369 = vmul.f32 %v368, %v368
    %v370 = vsub.f32 1.0, %v369
    %v371 = vmul.f32 %v370, 2.0
    %v372 = vadd.f32 %v371, 1e-06
    %v373 = vlog2.pop %v372
    %v374 = vmul.f32 %v373, 0.6931472
    %v375 = vsub.f32 %v367, %v374
    %vm376 = vcmask 1043456
    %v377 = vsel %vm376, %v375, 0.0
    %v378 = vrot.slane %v377, 4
    %v379 = vadd.f32 %v377, %v378
    %v380 = vrot.slane %v379, 2
    %v381 = vadd.f32 %v379, %v380
    %v382 = vrot.slane %v381, 1
    %v383 = vadd.f32 %v381, %v382
    %v384 = vmul.f32 %v368, 2.0
    %385 = vst [vmem:[#allocation2] sm:$0xf] %v384
    %386 = vst [vmem:[#allocation2] sm:$0xf0] %v360
    %387 = vst [vmem:[#allocation2 + $0x8] sm:$0x1] %v383
    // Predicated region
    $region34: #{tpu_custom_call.1} parent=1 // pred_check
      _
    $region35: #{tpu_custom_call.1} parent=1 // pred_check_branch
      %389 = sbr.rel (0) target = $region37
    $region36: #{tpu_custom_call.1} parent=1 // pred_region
      %s391 = ssub.s32 256, 256
      %392 = vsyncadd [#allocation3], %s391
      %s393 = sshll.u32 [#allocation2], 4
      %s394 = int_to_ptr.vmem [resolvable:$true] %s393
      %399 = dma.vmem_to_hbm [thread:$0]  %s394, 256, %s8, [#allocation3], 128, 128, 8
    $region37: #{tpu_custom_call.1} parent=1 // pred_fallthru
      _
    // Predicated region
    $region38: #{tpu_custom_call.1} parent=1 // pred_check
      _
    $region39: #{tpu_custom_call.1} parent=1 // pred_check_branch
      %401 = sbr.rel (0) target = $region41
    $region40: #{tpu_custom_call.1} parent=1 // pred_region
      %402 = dma.done [#allocation3], 256
    $region41: #{tpu_custom_call.1} parent=1 // pred_fallthru
      _
    %403 = vsyncpa [#allocation3], 1

</llo_original>
